<compile_context>
chip_gen: v7x
topology: tpu7x:2x2x1
jax: 0.10.0
libtpu: 0.0.40
codegen_flags: <defaults>
</compile_context>

<pallas_src>
import functools

import jax
import jax.numpy as jnp
import numpy as np
from jax import lax
from jax.experimental import pallas as pl
from jax.experimental.pallas import tpu as pltpu

SQRT_HALF = 0.7071067811865476
EPS = 1e-5  # PyTorch GroupNorm default eps


def _gelu_exact(x):
    # nn.GELU() / F.gelu default: exact erf formulation.
    # (tanh-approx GELU would move this to the EUP slot on v5e, but would
    # change numerics vs. the PyTorch module -> keep exact.)
    return 0.5 * x * (1.0 + lax.erf(x * SQRT_HALF))


def _group_norm_2d(y, gamma, beta):
    # y: (H, W*C) f32 for one sample; GroupNorm(num_groups=1): stats over all
    # C*H*W elements, biased variance, per-channel affine (gamma/beta tiled
    # across W -> shape (1, W*C)). Two-pass stats for stability.
    n = y.shape[0] * y.shape[1]
    mean = jnp.sum(y) / n
    c = y - mean
    var = jnp.sum(c * c) / n
    return c * lax.rsqrt(var + EPS) * gamma + beta


def _double_conv_kernel(x_ref, t1_ref, t2_ref, g1_ref, b1_ref, g2_ref, b2_ref,
                        o_ref, xband, mband, *, Nb, H, W, Cin, Cmid, Cout,
                        residual):
    bf16 = jnp.bfloat16
    WCin, WCmid, WCout = W * Cin, W * Cmid, W * Cout
    zx = jnp.zeros((1, WCin), bf16)
    zm = jnp.zeros((1, WCmid), bf16)

    # ---- stage input (cast f32->bf16 once) into the K-concatenated band
    #      scratch: columns [0:WCin]=row h-1, [WCin:2WCin]=row h,
    #      [2WCin:3WCin]=row h+1; one zero halo row per shifted band/sample.
    x_all = []
    for n in range(Nb):
        xn = x_ref[n]                                        # (H, W*Cin) f32
        x_all.append(xn)
        xb = xn.astype(bf16)
        r0 = n * H
        xband[r0:r0 + H, WCin:2 * WCin] = xb                      # dy=1
        xband[r0:r0 + 1, 0:WCin] = zx                             # dy=0 halo
        xband[r0 + 1:r0 + H, 0:WCin] = xb[0:H - 1]                # dy=0
        xband[r0:r0 + H - 1, 2 * WCin:3 * WCin] = xb[1:H]         # dy=2
        xband[r0 + H - 1:r0 + H, 2 * WCin:3 * WCin] = zx          # dy=2 halo

    # ---- conv1: single fused matmul, M = Nb*H, K = 3*W*Cin, N = W*Cmid ----
    acc1 = jnp.dot(xband[...], t1_ref[...],
                   preferred_element_type=jnp.float32)            # f32 acc

    # ---- GroupNorm(1, Cmid) + GELU, then stage mid activations (bf16) ----
    g1 = g1_ref[...]
    b1 = b1_ref[...]
    for n in range(Nb):
        r0 = n * H
        y1 = _gelu_exact(_group_norm_2d(acc1[r0:r0 + H, :], g1, b1))
        y1b = y1.astype(bf16)
        mband[r0:r0 + H, WCmid:2 * WCmid] = y1b
        mband[r0:r0 + 1, 0:WCmid] = zm
        mband[r0 + 1:r0 + H, 0:WCmid] = y1b[0:H - 1]
        mband[r0:r0 + H - 1, 2 * WCmid:3 * WCmid] = y1b[1:H]
        mband[r0 + H - 1:r0 + H, 2 * WCmid:3 * WCmid] = zm

    # ---- conv2: single fused matmul ----
    acc2 = jnp.dot(mband[...], t2_ref[...],
                   preferred_element_type=jnp.float32)

    # ---- GroupNorm(1, Cout) (+ residual GELU) and lane-dense store ----
    g2 = g2_ref[...]
    b2 = b2_ref[...]
    for n in range(Nb):
        r0 = n * H
        y2 = _group_norm_2d(acc2[r0:r0 + H, :], g2, b2)
        if residual:  # requires Cin == Cout (asserted in the wrapper)
            y2 = _gelu_exact(x_all[n] + y2)
        o_ref[n] = y2.astype(o_ref.dtype)


def _make_toeplitz(w_taps, Wsp):
    """(9, Cin, Cout) taps (t = dy*3+dx) -> (3, Wsp*Cin, Wsp*Cout) Toeplitz.

    T[dy, wi*Cin+ci, wo*Cout+co] = w[dy, wi-wo+1, ci, co] if 0<=wi-wo+1<=2
    else 0, so conv(x)[h, wo, co] = sum_dy x_row[h+dy-1] @ T[dy]; the W-axis
    zero padding of the conv is absorbed into the missing Toeplitz blocks.
    """
    _, Cin, Cout = w_taps.shape
    w = w_taps.reshape(3, 3, Cin, Cout)
    wi = jnp.arange(Wsp)[:, None]
    wo = jnp.arange(Wsp)[None, :]
    dx = wi - wo + 1                                   # (W, W)
    valid = (dx >= 0) & (dx <= 2)
    t = w[:, jnp.clip(dx, 0, 2)]                       # (3, W, W, Cin, Cout)
    t = jnp.where(valid[None, :, :, None, None], t, 0.0)
    return t.transpose(0, 1, 3, 2, 4).reshape(3, Wsp * Cin, Wsp * Cout)


def _pick_batch_block(N, H):
    # Fold batch samples into matmul M, targeting M = Nb*H >= ~256 (v6e/v7x
    # MXU rows); Nb must divide N so the grid tiles evenly.
    target = max(1, 256 // H)
    nb = 1
    for cand in range(1, N + 1):
        if N % cand == 0 and cand <= target:
            nb = cand
    return nb


def double_conv_folded(x_folded, W, params, residual=False):
    """Pallas DoubleConv on folded channels-last input (N, H, W*Cin) f32."""
    N, H, WCin = x_folded.shape
    Cin = WCin // W
    w1, w2 = params["w1"], params["w2"]          # (9, Cin, Cmid), (9, Cmid, Cout)
    Cmid, Cout = w1.shape[-1], w2.shape[-1]
    if residual:
        assert Cin == Cout, "residual DoubleConv requires in_channels == out_channels"

    # K-concatenated block-Toeplitz conv weights, shipped to the kernel in bf16.
    t1 = _make_toeplitz(w1, W).reshape(3 * W * Cin, W * Cmid).astype(jnp.bfloat16)
    t2 = _make_toeplitz(w2, W).reshape(3 * W * Cmid, W * Cout).astype(jnp.bfloat16)

    # Per-channel affine params tiled across W to match the folded layout.
    g1 = jnp.tile(params["g1"], W).reshape(1, W * Cmid).astype(jnp.float32)
    b1 = jnp.tile(params["b1"], W).reshape(1, W * Cmid).astype(jnp.float32)
    g2 = jnp.tile(params["g2"], W).reshape(1, W * Cout).astype(jnp.float32)
    b2 = jnp.tile(params["b2"], W).reshape(1, W * Cout).astype(jnp.float32)

    Nb = _pick_batch_block(N, H)
    kernel = functools.partial(_double_conv_kernel, Nb=Nb, H=H, W=W, Cin=Cin,
                               Cmid=Cmid, Cout=Cout, residual=residual)

    out = pl.pallas_call(
        kernel,
        out_shape=jax.ShapeDtypeStruct((N, H, W * Cout), jnp.float32),
        grid_spec=pltpu.PrefetchScalarGridSpec(
            num_scalar_prefetch=0,
            grid=(N // Nb,),
            in_specs=[
                pl.BlockSpec((Nb, H, W * Cin), lambda b: (b, 0, 0)),
                pl.BlockSpec((3 * W * Cin, W * Cmid), lambda b: (0, 0)),
                pl.BlockSpec((3 * W * Cmid, W * Cout), lambda b: (0, 0)),
                pl.BlockSpec((1, W * Cmid), lambda b: (0, 0)),
                pl.BlockSpec((1, W * Cmid), lambda b: (0, 0)),
                pl.BlockSpec((1, W * Cout), lambda b: (0, 0)),
                pl.BlockSpec((1, W * Cout), lambda b: (0, 0)),
            ],
            out_specs=pl.BlockSpec((Nb, H, W * Cout), lambda b: (b, 0, 0)),
            scratch_shapes=[
                pltpu.VMEM((Nb * H, 3 * W * Cin), jnp.bfloat16),   # x bands
                pltpu.VMEM((Nb * H, 3 * W * Cmid), jnp.bfloat16),  # mid bands
            ],
        ),
        compiler_params=pltpu.CompilerParams(dimension_semantics=("parallel",)),
    )(x_folded, t1, t2, g1, b1, g2, b2)
    return out


def double_conv(x_nchw, params, residual=False):
    """Pallas version of DoubleConv.forward. x_nchw: (N, Cin, H, W) float32."""
    # TODO(synk): in a real UNet keep activations in the folded (N, H, W*C)
    # layout across layers so these two full-HBM-round-trip transposes vanish.
    N, Cin, H, W = x_nchw.shape
    Cout = params["w2"].shape[-1]
    x = jnp.transpose(x_nchw, (0, 2, 3, 1)).astype(jnp.float32)
    x = x.reshape(N, H, W * Cin)
    out = double_conv_folded(x, W, params, residual=residual)
    return jnp.transpose(out.reshape(N, H, W, Cout), (0, 3, 1, 2))


# ---------------- pure-JAX reference (for correctness check) ----------------
def double_conv_ref(x_nchw, params, residual=False):
    x = jnp.transpose(x_nchw, (0, 2, 3, 1)).astype(jnp.float32)

    def conv(y, w_taps):
        k = w_taps.reshape(3, 3, w_taps.shape[1], w_taps.shape[2])  # HWIO
        return lax.conv_general_dilated(
            y, k, (1, 1), "SAME", dimension_numbers=("NHWC", "HWIO", "NHWC"))

    def gn(y, g, b):
        mean = jnp.mean(y, axis=(1, 2, 3), keepdims=True)
        var = jnp.mean((y - mean) ** 2, axis=(1, 2, 3), keepdims=True)
        return (y - mean) * lax.rsqrt(var + EPS) * g + b

    y = conv(x, params["w1"])
    y = _gelu_exact(gn(y, params["g1"], params["b1"]))
    y = conv(y, params["w2"])
    y = gn(y, params["g2"], params["b2"])
    if residual:
        y = _gelu_exact(x + y)
    return jnp.transpose(y, (0, 3, 1, 2))


def make_params(key, cin, cmid, cout):
    ks = jax.random.split(key, 6)
    return {
        # conv weights stored as (tap=dy*3+dx, Cin, Cout); equivalent to a
        # PyTorch (Cout, Cin, 3, 3) weight via transpose(2,3,1,0).reshape(9,Cin,Cout)
        "w1": 0.1 * jax.random.normal(ks[0], (9, cin, cmid), jnp.float32),
        "w2": 0.1 * jax.random.normal(ks[1], (9, cmid, cout), jnp.float32),
        "g1": 1.0 + 0.1 * jax.random.normal(ks[2], (cmid,), jnp.float32),
        "b1": 0.1 * jax.random.normal(ks[3], (cmid,), jnp.float32),
        "g2": 1.0 + 0.1 * jax.random.normal(ks[4], (cout,), jnp.float32),
        "b2": 0.1 * jax.random.normal(ks[5], (cout,), jnp.float32),
    }


if __name__ == "__main__":
    key = jax.random.PRNGKey(0)
    k_x1, k_x2, k_p1, k_p2 = jax.random.split(key, 4)

    # bf16 matmul operands (f32 accumulation) vs f32 reference -> loosened tol.
    RTOL = ATOL = 2e-2

    # non-residual: DoubleConv(in=4, out=8)  (mid defaults to out)
    N, Cin, H, W = 2, 4, 16, 16
    Cmid = Cout = 8
    x1 = jax.random.normal(k_x1, (N, Cin, H, W), jnp.float32)
    p1 = make_params(k_p1, Cin, Cmid, Cout)
    out1 = jax.block_until_ready(double_conv(x1, p1, residual=False))
    ref1 = jax.block_until_ready(double_conv_ref(x1, p1, residual=False))
    np.testing.assert_allclose(np.asarray(out1), np.asarray(ref1),
                               rtol=RTOL, atol=ATOL)

    # residual: DoubleConv(in=8, out=8, residual=True)
    x2 = jax.random.normal(k_x2, (N, 8, H, W), jnp.float32)
    p2 = make_params(k_p2, 8, 8, 8)
    out2 = jax.block_until_ready(double_conv(x2, p2, residual=True))
    ref2 = jax.block_until_ready(double_conv_ref(x2, p2, residual=True))
    np.testing.assert_allclose(np.asarray(out2), np.asarray(ref2),
                               rtol=RTOL, atol=ATOL)

    print("KERNEL_OK")
</pallas_src>

<mosaic_0001>
module attributes {stable_mosaic.version = 11 : i64} {
  func.func @_double_conv_kernel(%arg0: i32, %arg1: memref<2x16x64xf32, #tpu.memory_space<vmem>>, %arg2: memref<192x128xbf16, #tpu.memory_space<vmem>>, %arg3: memref<384x128xbf16, #tpu.memory_space<vmem>>, %arg4: memref<1x128xf32, #tpu.memory_space<vmem>>, %arg5: memref<1x128xf32, #tpu.memory_space<vmem>>, %arg6: memref<1x128xf32, #tpu.memory_space<vmem>>, %arg7: memref<1x128xf32, #tpu.memory_space<vmem>>, %arg8: memref<2x16x128xf32, #tpu.memory_space<vmem>>, %arg9: memref<32x192xbf16, #tpu.memory_space<vmem>>, %arg10: memref<32x384xbf16, #tpu.memory_space<vmem>>) attributes {dimension_semantics = [#tpu.dimension_semantics<parallel>], iteration_bounds = array<i64: 1>, scalar_prefetch = 0 : i64, scratch_operands = 2 : i64, tpu.core_type = #tpu.core_type<tc>, window_params = [{transform_indices = @transform_0, window_bounds = array<i64: 2, 16, 64>}, {pipeline_mode = #tpu.pipeline_mode<synchronous>, transform_indices = @transform_1, window_bounds = array<i64: 192, 128>}, {pipeline_mode = #tpu.pipeline_mode<synchronous>, transform_indices = @transform_2, window_bounds = array<i64: 384, 128>}, {pipeline_mode = #tpu.pipeline_mode<synchronous>, transform_indices = @transform_3, window_bounds = array<i64: 1, 128>}, {pipeline_mode = #tpu.pipeline_mode<synchronous>, transform_indices = @transform_4, window_bounds = array<i64: 1, 128>}, {pipeline_mode = #tpu.pipeline_mode<synchronous>, transform_indices = @transform_5, window_bounds = array<i64: 1, 128>}, {pipeline_mode = #tpu.pipeline_mode<synchronous>, transform_indices = @transform_6, window_bounds = array<i64: 1, 128>}, {transform_indices = @transform_7, window_bounds = array<i64: 2, 16, 128>}]} {
    %cst = arith.constant 0.000000e+00 : bf16
    %0 = vector.broadcast %cst : bf16 to vector<1x64xbf16>
    %cst_0 = arith.constant 0.000000e+00 : bf16
    %1 = vector.broadcast %cst_0 : bf16 to vector<1x128xbf16>
    %c0 = arith.constant 0 : index
    %c0_1 = arith.constant 0 : index
    %c0_2 = arith.constant 0 : index
    %2 = vector.load %arg1[%c0, %c0_1, %c0_2] : memref<2x16x64xf32, #tpu.memory_space<vmem>>, vector<1x16x64xf32>
    %3 = vector.shape_cast %2 : vector<1x16x64xf32> to vector<16x64xf32>
    %4 = arith.truncf %3 : vector<16x64xf32> to vector<16x64xbf16>
    %c0_3 = arith.constant 0 : index
    %c64 = arith.constant 64 : index
    %5 = vector.load %arg9[%c0_3, %c64] : memref<32x192xbf16, #tpu.memory_space<vmem>>, vector<16x64xbf16>
    tpu.vector_store %arg9[%c0_3, %c64], %4 {strides = array<i32>} : memref<32x192xbf16, #tpu.memory_space<vmem>>, vector<16x64xbf16>,
    %c0_4 = arith.constant 0 : index
    %c0_5 = arith.constant 0 : index
    %6 = vector.load %arg9[%c0_4, %c0_5] : memref<32x192xbf16, #tpu.memory_space<vmem>>, vector<1x64xbf16>
    tpu.vector_store %arg9[%c0_4, %c0_5], %0 {strides = array<i32>} : memref<32x192xbf16, #tpu.memory_space<vmem>>, vector<1x64xbf16>,
    %7 = vector.extract_strided_slice %4 {offsets = [0, 0], sizes = [15, 64], strides = [1, 1]} : vector<16x64xbf16> to vector<15x64xbf16>
    %c1 = arith.constant 1 : index
    %c0_6 = arith.constant 0 : index
    %8 = vector.load %arg9[%c1, %c0_6] : memref<32x192xbf16, #tpu.memory_space<vmem>>, vector<15x64xbf16>
    tpu.vector_store %arg9[%c1, %c0_6], %7 {strides = array<i32>} : memref<32x192xbf16, #tpu.memory_space<vmem>>, vector<15x64xbf16>,
    %9 = vector.extract_strided_slice %4 {offsets = [1, 0], sizes = [15, 64], strides = [1, 1]} : vector<16x64xbf16> to vector<15x64xbf16>
    %c0_7 = arith.constant 0 : index
    %c128 = arith.constant 128 : index
    %10 = vector.load %arg9[%c0_7, %c128] : memref<32x192xbf16, #tpu.memory_space<vmem>>, vector<15x64xbf16>
    tpu.vector_store %arg9[%c0_7, %c128], %9 {strides = array<i32>} : memref<32x192xbf16, #tpu.memory_space<vmem>>, vector<15x64xbf16>,
    %c15 = arith.constant 15 : index
    %c128_8 = arith.constant 128 : index
    %11 = vector.load %arg9[%c15, %c128_8] : memref<32x192xbf16, #tpu.memory_space<vmem>>, vector<1x64xbf16>
    tpu.vector_store %arg9[%c15, %c128_8], %0 {strides = array<i32>} : memref<32x192xbf16, #tpu.memory_space<vmem>>, vector<1x64xbf16>,
    %c1_9 = arith.constant 1 : index
    %c0_10 = arith.constant 0 : index
    %c0_11 = arith.constant 0 : index
    %12 = vector.load %arg1[%c1_9, %c0_10, %c0_11] : memref<2x16x64xf32, #tpu.memory_space<vmem>>, vector<1x16x64xf32>
    %13 = vector.shape_cast %12 : vector<1x16x64xf32> to vector<16x64xf32>
    %14 = arith.truncf %13 : vector<16x64xf32> to vector<16x64xbf16>
    %c16 = arith.constant 16 : index
    %c64_12 = arith.constant 64 : index
    %15 = vector.load %arg9[%c16, %c64_12] : memref<32x192xbf16, #tpu.memory_space<vmem>>, vector<16x64xbf16>
    tpu.vector_store %arg9[%c16, %c64_12], %14 {strides = array<i32>} : memref<32x192xbf16, #tpu.memory_space<vmem>>, vector<16x64xbf16>,
    %c16_13 = arith.constant 16 : index
    %c0_14 = arith.constant 0 : index
    %16 = vector.load %arg9[%c16_13, %c0_14] : memref<32x192xbf16, #tpu.memory_space<vmem>>, vector<1x64xbf16>
    tpu.vector_store %arg9[%c16_13, %c0_14], %0 {strides = array<i32>} : memref<32x192xbf16, #tpu.memory_space<vmem>>, vector<1x64xbf16>,
    %17 = vector.extract_strided_slice %14 {offsets = [0, 0], sizes = [15, 64], strides = [1, 1]} : vector<16x64xbf16> to vector<15x64xbf16>
    %c17 = arith.constant 17 : index
    %c0_15 = arith.constant 0 : index
    %18 = vector.load %arg9[%c17, %c0_15] : memref<32x192xbf16, #tpu.memory_space<vmem>>, vector<15x64xbf16>
    tpu.vector_store %arg9[%c17, %c0_15], %17 {strides = array<i32>} : memref<32x192xbf16, #tpu.memory_space<vmem>>, vector<15x64xbf16>,
    %19 = vector.extract_strided_slice %14 {offsets = [1, 0], sizes = [15, 64], strides = [1, 1]} : vector<16x64xbf16> to vector<15x64xbf16>
    %c16_16 = arith.constant 16 : index
    %c128_17 = arith.constant 128 : index
    %20 = vector.load %arg9[%c16_16, %c128_17] : memref<32x192xbf16, #tpu.memory_space<vmem>>, vector<15x64xbf16>
    tpu.vector_store %arg9[%c16_16, %c128_17], %19 {strides = array<i32>} : memref<32x192xbf16, #tpu.memory_space<vmem>>, vector<15x64xbf16>,
    %c31 = arith.constant 31 : index
    %c128_18 = arith.constant 128 : index
    %21 = vector.load %arg9[%c31, %c128_18] : memref<32x192xbf16, #tpu.memory_space<vmem>>, vector<1x64xbf16>
    tpu.vector_store %arg9[%c31, %c128_18], %0 {strides = array<i32>} : memref<32x192xbf16, #tpu.memory_space<vmem>>, vector<1x64xbf16>,
    %c0_19 = arith.constant 0 : index
    %c0_20 = arith.constant 0 : index
    %22 = vector.load %arg9[%c0_19, %c0_20] : memref<32x192xbf16, #tpu.memory_space<vmem>>, vector<32x192xbf16>
    %c0_21 = arith.constant 0 : index
    %c0_22 = arith.constant 0 : index
    %23 = vector.load %arg2[%c0_21, %c0_22] : memref<192x128xbf16, #tpu.memory_space<vmem>>, vector<192x128xbf16>
    %cst_23 = arith.constant dense<0.000000e+00> : vector<32x128xf32>
    %24 = tpu.matmul %22, %23, %cst_23 {dimension_numbers = #tpu.dot_dimension_numbers<[1], [0], [0], [1], [0, 0, 1, 1], [], []>} : vector<32x192xbf16>, vector<192x128xbf16>, vector<32x128xf32> -> vector<32x128xf32>
    %c0_24 = arith.constant 0 : index
    %c0_25 = arith.constant 0 : index
    %25 = vector.load %arg4[%c0_24, %c0_25] : memref<1x128xf32, #tpu.memory_space<vmem>>, vector<1x128xf32>
    %c0_26 = arith.constant 0 : index
    %c0_27 = arith.constant 0 : index
    %26 = vector.load %arg5[%c0_26, %c0_27] : memref<1x128xf32, #tpu.memory_space<vmem>>, vector<1x128xf32>
    %27 = vector.extract_strided_slice %24 {offsets = [0, 0], sizes = [16, 128], strides = [1, 1]} : vector<32x128xf32> to vector<16x128xf32>
    %28 = vector.shape_cast %27 : vector<16x128xf32> to vector<1x16x128xf32>
    %cst_28 = arith.constant dense<0.000000e+00> : vector<1xf32>
    %29 = vector.multi_reduction <add>, %28, %cst_28 [1, 2] : vector<1x16x128xf32> to vector<1xf32>
    %30 = vector.shape_cast %29 : vector<1xf32> to vector<1x1x1xf32>
    %31 = vector.extract %30[0, 0, 0] : f32 from vector<1x1x1xf32>
    %cst_29 = arith.constant 2.048000e+03 : f32
    %32 = arith.divf %31, %cst_29 : f32
    %33 = vector.broadcast %32 : f32 to vector<16x128xf32>
    %34 = arith.subf %27, %33 : vector<16x128xf32>
    %35 = arith.mulf %34, %34 : vector<16x128xf32>
    %36 = vector.shape_cast %35 : vector<16x128xf32> to vector<1x16x128xf32>
    %cst_30 = arith.constant dense<0.000000e+00> : vector<1xf32>
    %37 = vector.multi_reduction <add>, %36, %cst_30 [1, 2] : vector<1x16x128xf32> to vector<1xf32>
    %38 = vector.shape_cast %37 : vector<1xf32> to vector<1x1x1xf32>
    %39 = vector.extract %38[0, 0, 0] : f32 from vector<1x1x1xf32>
    %cst_31 = arith.constant 2.048000e+03 : f32
    %40 = arith.divf %39, %cst_31 : f32
    %cst_32 = arith.constant 9.99999974E-6 : f32
    %41 = arith.addf %40, %cst_32 : f32
    %42 = math.rsqrt %41 : f32
    %43 = vector.broadcast %42 : f32 to vector<16x128xf32>
    %44 = arith.mulf %34, %43 : vector<16x128xf32>
    %45 = vector.broadcast %25 : vector<1x128xf32> to vector<16x128xf32>
    %46 = arith.mulf %44, %45 : vector<16x128xf32>
    %47 = vector.broadcast %26 : vector<1x128xf32> to vector<16x128xf32>
    %48 = arith.addf %46, %47 : vector<16x128xf32>
    %cst_33 = arith.constant 5.000000e-01 : f32
    %49 = vector.broadcast %cst_33 : f32 to vector<16x128xf32>
    %50 = arith.mulf %49, %48 : vector<16x128xf32>
    %cst_34 = arith.constant 0.707106769 : f32
    %51 = vector.broadcast %cst_34 : f32 to vector<16x128xf32>
    %52 = arith.mulf %48, %51 : vector<16x128xf32>
    %53 = math.erf %52 : vector<16x128xf32>
    %cst_35 = arith.constant 1.000000e+00 : f32
    %54 = vector.broadcast %cst_35 : f32 to vector<16x128xf32>
    %55 = arith.addf %54, %53 : vector<16x128xf32>
    %56 = arith.mulf %50, %55 : vector<16x128xf32>
    %57 = arith.truncf %56 : vector<16x128xf32> to vector<16x128xbf16>
    %c0_36 = arith.constant 0 : index
    %c128_37 = arith.constant 128 : index
    %58 = vector.load %arg10[%c0_36, %c128_37] : memref<32x384xbf16, #tpu.memory_space<vmem>>, vector<16x128xbf16>
    tpu.vector_store %arg10[%c0_36, %c128_37], %57 {strides = array<i32>} : memref<32x384xbf16, #tpu.memory_space<vmem>>, vector<16x128xbf16>,
    %c0_38 = arith.constant 0 : index
    %c0_39 = arith.constant 0 : index
    %59 = vector.load %arg10[%c0_38, %c0_39] : memref<32x384xbf16, #tpu.memory_space<vmem>>, vector<1x128xbf16>
    tpu.vector_store %arg10[%c0_38, %c0_39], %1 {strides = array<i32>} : memref<32x384xbf16, #tpu.memory_space<vmem>>, vector<1x128xbf16>,
    %60 = vector.extract_strided_slice %57 {offsets = [0, 0], sizes = [15, 128], strides = [1, 1]} : vector<16x128xbf16> to vector<15x128xbf16>
    %c1_40 = arith.constant 1 : index
    %c0_41 = arith.constant 0 : index
    %61 = vector.load %arg10[%c1_40, %c0_41] : memref<32x384xbf16, #tpu.memory_space<vmem>>, vector<15x128xbf16>
    tpu.vector_store %arg10[%c1_40, %c0_41], %60 {strides = array<i32>} : memref<32x384xbf16, #tpu.memory_space<vmem>>, vector<15x128xbf16>,
    %62 = vector.extract_strided_slice %57 {offsets = [1, 0], sizes = [15, 128], strides = [1, 1]} : vector<16x128xbf16> to vector<15x128xbf16>
    %c0_42 = arith.constant 0 : index
    %c256 = arith.constant 256 : index
    %63 = vector.load %arg10[%c0_42, %c256] : memref<32x384xbf16, #tpu.memory_space<vmem>>, vector<15x128xbf16>
    tpu.vector_store %arg10[%c0_42, %c256], %62 {strides = array<i32>} : memref<32x384xbf16, #tpu.memory_space<vmem>>, vector<15x128xbf16>,
    %c15_43 = arith.constant 15 : index
    %c256_44 = arith.constant 256 : index
    %64 = vector.load %arg10[%c15_43, %c256_44] : memref<32x384xbf16, #tpu.memory_space<vmem>>, vector<1x128xbf16>
    tpu.vector_store %arg10[%c15_43, %c256_44], %1 {strides = array<i32>} : memref<32x384xbf16, #tpu.memory_space<vmem>>, vector<1x128xbf16>,
    %65 = vector.extract_strided_slice %24 {offsets = [16, 0], sizes = [16, 128], strides = [1, 1]} : vector<32x128xf32> to vector<16x128xf32>
    %66 = vector.shape_cast %65 : vector<16x128xf32> to vector<1x16x128xf32>
    %cst_45 = arith.constant dense<0.000000e+00> : vector<1xf32>
    %67 = vector.multi_reduction <add>, %66, %cst_45 [1, 2] : vector<1x16x128xf32> to vector<1xf32>
    %68 = vector.shape_cast %67 : vector<1xf32> to vector<1x1x1xf32>
    %69 = vector.extract %68[0, 0, 0] : f32 from vector<1x1x1xf32>
    %cst_46 = arith.constant 2.048000e+03 : f32
    %70 = arith.divf %69, %cst_46 : f32
    %71 = vector.broadcast %70 : f32 to vector<16x128xf32>
    %72 = arith.subf %65, %71 : vector<16x128xf32>
    %73 = arith.mulf %72, %72 : vector<16x128xf32>
    %74 = vector.shape_cast %73 : vector<16x128xf32> to vector<1x16x128xf32>
    %cst_47 = arith.constant dense<0.000000e+00> : vector<1xf32>
    %75 = vector.multi_reduction <add>, %74, %cst_47 [1, 2] : vector<1x16x128xf32> to vector<1xf32>
    %76 = vector.shape_cast %75 : vector<1xf32> to vector<1x1x1xf32>
    %77 = vector.extract %76[0, 0, 0] : f32 from vector<1x1x1xf32>
    %cst_48 = arith.constant 2.048000e+03 : f32
    %78 = arith.divf %77, %cst_48 : f32
    %cst_49 = arith.constant 9.99999974E-6 : f32
    %79 = arith.addf %78, %cst_49 : f32
    %80 = math.rsqrt %79 : f32
    %81 = vector.broadcast %80 : f32 to vector<16x128xf32>
    %82 = arith.mulf %72, %81 : vector<16x128xf32>
    %83 = vector.broadcast %25 : vector<1x128xf32> to vector<16x128xf32>
    %84 = arith.mulf %82, %83 : vector<16x128xf32>
    %85 = vector.broadcast %26 : vector<1x128xf32> to vector<16x128xf32>
    %86 = arith.addf %84, %85 : vector<16x128xf32>
    %cst_50 = arith.constant 5.000000e-01 : f32
    %87 = vector.broadcast %cst_50 : f32 to vector<16x128xf32>
    %88 = arith.mulf %87, %86 : vector<16x128xf32>
    %cst_51 = arith.constant 0.707106769 : f32
    %89 = vector.broadcast %cst_51 : f32 to vector<16x128xf32>
    %90 = arith.mulf %86, %89 : vector<16x128xf32>
    %91 = math.erf %90 : vector<16x128xf32>
    %cst_52 = arith.constant 1.000000e+00 : f32
    %92 = vector.broadcast %cst_52 : f32 to vector<16x128xf32>
    %93 = arith.addf %92, %91 : vector<16x128xf32>
    %94 = arith.mulf %88, %93 : vector<16x128xf32>
    %95 = arith.truncf %94 : vector<16x128xf32> to vector<16x128xbf16>
    %c16_53 = arith.constant 16 : index
    %c128_54 = arith.constant 128 : index
    %96 = vector.load %arg10[%c16_53, %c128_54] : memref<32x384xbf16, #tpu.memory_space<vmem>>, vector<16x128xbf16>
    tpu.vector_store %arg10[%c16_53, %c128_54], %95 {strides = array<i32>} : memref<32x384xbf16, #tpu.memory_space<vmem>>, vector<16x128xbf16>,
    %c16_55 = arith.constant 16 : index
    %c0_56 = arith.constant 0 : index
    %97 = vector.load %arg10[%c16_55, %c0_56] : memref<32x384xbf16, #tpu.memory_space<vmem>>, vector<1x128xbf16>
    tpu.vector_store %arg10[%c16_55, %c0_56], %1 {strides = array<i32>} : memref<32x384xbf16, #tpu.memory_space<vmem>>, vector<1x128xbf16>,
    %98 = vector.extract_strided_slice %95 {offsets = [0, 0], sizes = [15, 128], strides = [1, 1]} : vector<16x128xbf16> to vector<15x128xbf16>
    %c17_57 = arith.constant 17 : index
    %c0_58 = arith.constant 0 : index
    %99 = vector.load %arg10[%c17_57, %c0_58] : memref<32x384xbf16, #tpu.memory_space<vmem>>, vector<15x128xbf16>
    tpu.vector_store %arg10[%c17_57, %c0_58], %98 {strides = array<i32>} : memref<32x384xbf16, #tpu.memory_space<vmem>>, vector<15x128xbf16>,
    %100 = vector.extract_strided_slice %95 {offsets = [1, 0], sizes = [15, 128], strides = [1, 1]} : vector<16x128xbf16> to vector<15x128xbf16>
    %c16_59 = arith.constant 16 : index
    %c256_60 = arith.constant 256 : index
    %101 = vector.load %arg10[%c16_59, %c256_60] : memref<32x384xbf16, #tpu.memory_space<vmem>>, vector<15x128xbf16>
    tpu.vector_store %arg10[%c16_59, %c256_60], %100 {strides = array<i32>} : memref<32x384xbf16, #tpu.memory_space<vmem>>, vector<15x128xbf16>,
    %c31_61 = arith.constant 31 : index
    %c256_62 = arith.constant 256 : index
    %102 = vector.load %arg10[%c31_61, %c256_62] : memref<32x384xbf16, #tpu.memory_space<vmem>>, vector<1x128xbf16>
    tpu.vector_store %arg10[%c31_61, %c256_62], %1 {strides = array<i32>} : memref<32x384xbf16, #tpu.memory_space<vmem>>, vector<1x128xbf16>,
    %c0_63 = arith.constant 0 : index
    %c0_64 = arith.constant 0 : index
    %103 = vector.load %arg10[%c0_63, %c0_64] : memref<32x384xbf16, #tpu.memory_space<vmem>>, vector<32x384xbf16>
    %c0_65 = arith.constant 0 : index
    %c0_66 = arith.constant 0 : index
    %104 = vector.load %arg3[%c0_65, %c0_66] : memref<384x128xbf16, #tpu.memory_space<vmem>>, vector<384x128xbf16>
    %cst_67 = arith.constant dense<0.000000e+00> : vector<32x128xf32>
    %105 = tpu.matmul %103, %104, %cst_67 {dimension_numbers = #tpu.dot_dimension_numbers<[1], [0], [0], [1], [0, 0, 1, 1], [], []>} : vector<32x384xbf16>, vector<384x128xbf16>, vector<32x128xf32> -> vector<32x128xf32>
    %c0_68 = arith.constant 0 : index
    %c0_69 = arith.constant 0 : index
    %106 = vector.load %arg6[%c0_68, %c0_69] : memref<1x128xf32, #tpu.memory_space<vmem>>, vector<1x128xf32>
    %c0_70 = arith.constant 0 : index
    %c0_71 = arith.constant 0 : index
    %107 = vector.load %arg7[%c0_70, %c0_71] : memref<1x128xf32, #tpu.memory_space<vmem>>, vector<1x128xf32>
    %108 = vector.extract_strided_slice %105 {offsets = [0, 0], sizes = [16, 128], strides = [1, 1]} : vector<32x128xf32> to vector<16x128xf32>
    %109 = vector.shape_cast %108 : vector<16x128xf32> to vector<1x16x128xf32>
    %cst_72 = arith.constant dense<0.000000e+00> : vector<1xf32>
    %110 = vector.multi_reduction <add>, %109, %cst_72 [1, 2] : vector<1x16x128xf32> to vector<1xf32>
    %111 = vector.shape_cast %110 : vector<1xf32> to vector<1x1x1xf32>
    %112 = vector.extract %111[0, 0, 0] : f32 from vector<1x1x1xf32>
    %cst_73 = arith.constant 2.048000e+03 : f32
    %113 = arith.divf %112, %cst_73 : f32
    %114 = vector.broadcast %113 : f32 to vector<16x128xf32>
    %115 = arith.subf %108, %114 : vector<16x128xf32>
    %116 = arith.mulf %115, %115 : vector<16x128xf32>
    %117 = vector.shape_cast %116 : vector<16x128xf32> to vector<1x16x128xf32>
    %cst_74 = arith.constant dense<0.000000e+00> : vector<1xf32>
    %118 = vector.multi_reduction <add>, %117, %cst_74 [1, 2] : vector<1x16x128xf32> to vector<1xf32>
    %119 = vector.shape_cast %118 : vector<1xf32> to vector<1x1x1xf32>
    %120 = vector.extract %119[0, 0, 0] : f32 from vector<1x1x1xf32>
    %cst_75 = arith.constant 2.048000e+03 : f32
    %121 = arith.divf %120, %cst_75 : f32
    %cst_76 = arith.constant 9.99999974E-6 : f32
    %122 = arith.addf %121, %cst_76 : f32
    %123 = math.rsqrt %122 : f32
    %124 = vector.broadcast %123 : f32 to vector<16x128xf32>
    %125 = arith.mulf %115, %124 : vector<16x128xf32>
    %126 = vector.broadcast %106 : vector<1x128xf32> to vector<16x128xf32>
    %127 = arith.mulf %125, %126 : vector<16x128xf32>
    %128 = vector.broadcast %107 : vector<1x128xf32> to vector<16x128xf32>
    %129 = arith.addf %127, %128 : vector<16x128xf32>
    %c0_77 = arith.constant 0 : index
    %c0_78 = arith.constant 0 : index
    %c0_79 = arith.constant 0 : index
    %130 = vector.load %arg8[%c0_77, %c0_78, %c0_79] : memref<2x16x128xf32, #tpu.memory_space<vmem>>, vector<1x16x128xf32>
    %131 = vector.shape_cast %130 : vector<1x16x128xf32> to vector<16x128xf32>
    %132 = vector.shape_cast %129 : vector<16x128xf32> to vector<1x16x128xf32>
    tpu.vector_store %arg8[%c0_77, %c0_78, %c0_79], %132 {strides = array<i32>} : memref<2x16x128xf32, #tpu.memory_space<vmem>>, vector<1x16x128xf32>,
    %133 = vector.extract_strided_slice %105 {offsets = [16, 0], sizes = [16, 128], strides = [1, 1]} : vector<32x128xf32> to vector<16x128xf32>
    %134 = vector.shape_cast %133 : vector<16x128xf32> to vector<1x16x128xf32>
    %cst_80 = arith.constant dense<0.000000e+00> : vector<1xf32>
    %135 = vector.multi_reduction <add>, %134, %cst_80 [1, 2] : vector<1x16x128xf32> to vector<1xf32>
    %136 = vector.shape_cast %135 : vector<1xf32> to vector<1x1x1xf32>
    %137 = vector.extract %136[0, 0, 0] : f32 from vector<1x1x1xf32>
    %cst_81 = arith.constant 2.048000e+03 : f32
    %138 = arith.divf %137, %cst_81 : f32
    %139 = vector.broadcast %138 : f32 to vector<16x128xf32>
    %140 = arith.subf %133, %139 : vector<16x128xf32>
    %141 = arith.mulf %140, %140 : vector<16x128xf32>
    %142 = vector.shape_cast %141 : vector<16x128xf32> to vector<1x16x128xf32>
    %cst_82 = arith.constant dense<0.000000e+00> : vector<1xf32>
    %143 = vector.multi_reduction <add>, %142, %cst_82 [1, 2] : vector<1x16x128xf32> to vector<1xf32>
    %144 = vector.shape_cast %143 : vector<1xf32> to vector<1x1x1xf32>
    %145 = vector.extract %144[0, 0, 0] : f32 from vector<1x1x1xf32>
    %cst_83 = arith.constant 2.048000e+03 : f32
    %146 = arith.divf %145, %cst_83 : f32
    %cst_84 = arith.constant 9.99999974E-6 : f32
    %147 = arith.addf %146, %cst_84 : f32
    %148 = math.rsqrt %147 : f32
    %149 = vector.broadcast %148 : f32 to vector<16x128xf32>
    %150 = arith.mulf %140, %149 : vector<16x128xf32>
    %151 = vector.broadcast %106 : vector<1x128xf32> to vector<16x128xf32>
    %152 = arith.mulf %150, %151 : vector<16x128xf32>
    %153 = vector.broadcast %107 : vector<1x128xf32> to vector<16x128xf32>
    %154 = arith.addf %152, %153 : vector<16x128xf32>
    %c1_85 = arith.constant 1 : index
    %c0_86 = arith.constant 0 : index
    %c0_87 = arith.constant 0 : index
    %155 = vector.load %arg8[%c1_85, %c0_86, %c0_87] : memref<2x16x128xf32, #tpu.memory_space<vmem>>, vector<1x16x128xf32>
    %156 = vector.shape_cast %155 : vector<1x16x128xf32> to vector<16x128xf32>
    %157 = vector.shape_cast %154 : vector<16x128xf32> to vector<1x16x128xf32>
    tpu.vector_store %arg8[%c1_85, %c0_86, %c0_87], %157 {strides = array<i32>} : memref<2x16x128xf32, #tpu.memory_space<vmem>>, vector<1x16x128xf32>,
    return
  }
  func.func @transform_0(%arg0: i32) -> (i32, i32, i32) {
    %c0_i32 = arith.constant 0 : i32
    %c0_i32_0 = arith.constant 0 : i32
    %c0_i32_1 = arith.constant 0 : i32
    return %arg0, %c0_i32, %c0_i32_0 : i32, i32, i32
  }
  func.func @transform_1(%arg0: i32) -> (i32, i32) {
    %c0_i32 = arith.constant 0 : i32
    %c0_i32_0 = arith.constant 0 : i32
    %c0_i32_1 = arith.constant 0 : i32
    return %c0_i32, %c0_i32_0 : i32, i32
  }
  func.func @transform_2(%arg0: i32) -> (i32, i32) {
    %c0_i32 = arith.constant 0 : i32
    %c0_i32_0 = arith.constant 0 : i32
    %c0_i32_1 = arith.constant 0 : i32
    return %c0_i32, %c0_i32_0 : i32, i32
  }
  func.func @transform_3(%arg0: i32) -> (i32, i32) {
    %c0_i32 = arith.constant 0 : i32
    %c0_i32_0 = arith.constant 0 : i32
    %c0_i32_1 = arith.constant 0 : i32
    return %c0_i32, %c0_i32_0 : i32, i32
  }
  func.func @transform_4(%arg0: i32) -> (i32, i32) {
    %c0_i32 = arith.constant 0 : i32
    %c0_i32_0 = arith.constant 0 : i32
    %c0_i32_1 = arith.constant 0 : i32
    return %c0_i32, %c0_i32_0 : i32, i32
  }
  func.func @transform_5(%arg0: i32) -> (i32, i32) {
    %c0_i32 = arith.constant 0 : i32
    %c0_i32_0 = arith.constant 0 : i32
    %c0_i32_1 = arith.constant 0 : i32
    return %c0_i32, %c0_i32_0 : i32, i32
  }
  func.func @transform_6(%arg0: i32) -> (i32, i32) {
    %c0_i32 = arith.constant 0 : i32
    %c0_i32_0 = arith.constant 0 : i32
    %c0_i32_1 = arith.constant 0 : i32
    return %c0_i32, %c0_i32_0 : i32, i32
  }
  func.func @transform_7(%arg0: i32) -> (i32, i32, i32) {
    %c0_i32 = arith.constant 0 : i32
    %c0_i32_0 = arith.constant 0 : i32
    %c0_i32_1 = arith.constant 0 : i32
    return %arg0, %c0_i32, %c0_i32_0 : i32, i32, i32
  }
}

</mosaic_0001>

<llo_original>
// kernel: tpu_custom_call.1
$region0: #{tpu_custom_call.1}
  #allocation0 [shape = 'u32[]', space=smem, size = 0x4, offset = 0x4, fixed_abs, tag = 'smem constant byte address 0x4 - core index']
  #allocation1 [shape = 'u32[144,128]{1,0:T(1,128)}', space=vmem, size = 0x12000, scoped, tag = 'internal scratch']
  #allocation2 [shape = 'bf16[32,192]{1,0:T(16,128)(2,1)}', space=vmem, size = 0x4000, scoped, tag = 'scratch operand']
  #allocation3 [shape = 'bf16[32,384]{1,0:T(16,128)(2,1)}', space=vmem, size = 0x6000, scoped, tag = 'scratch operand']
  %s0 = inlined_call_operand.hbm [shape: f32[2,16,64], index: 0, kind: input, shape index: {}]
  %s1 = inlined_call_operand.hbm [shape: bf16[192,128], index: 1, kind: input, shape index: {}]
  %s2 = inlined_call_operand.hbm [shape: bf16[384,128], index: 2, kind: input, shape index: {}]
  %s3 = inlined_call_operand.vmem [shape: f32[1,128], index: 3, kind: input, shape index: {}]
  %s4 = inlined_call_operand.vmem [shape: f32[1,128], index: 4, kind: input, shape index: {}]
  %s5 = inlined_call_operand.vmem [shape: f32[1,128], index: 5, kind: input, shape index: {}]
  %s6 = inlined_call_operand.vmem [shape: f32[1,128], index: 6, kind: input, shape index: {}]
  %s7 = inlined_call_operand.hbm [shape: f32[2,16,128], index: 7, kind: output, shape index: {}]
  %s8 = sld [smem:[#allocation0]]
  $region50: #{tpu_custom_call.1} parent=0
    _
  %s10 = ssub.s32 1, %s8
  %s11 = scalar_select 0, %s10, %s8
  $region1: #{tpu_custom_call.1} parent=0
    #allocation4 [shape = 'u8[16384]{0}', space=vmem, size = 0x4000, scoped, tag = 'input window, operand 0, single buffered']
    #allocation5 [shape = 's32[1]{0}', space=sflag, size = 0x4, scoped, tag = 'scoped memory for tpu_custom_call.1']
    #allocation6 [shape = 's32[1]{0}', space=sflag, size = 0x4, scoped, tag = 'scoped memory for tpu_custom_call.1']
    #allocation7 [shape = 'u8[49152]{0}', space=vmem, size = 0xc000, scoped, tag = 'input window, operand 1, single buffered']
    #allocation8 [shape = 's32[1]{0}', space=sflag, size = 0x4, scoped, tag = 'scoped memory for tpu_custom_call.1']
    #allocation9 [shape = 'u8[98304]{0}', space=vmem, size = 0x18000, scoped, tag = 'input window, operand 2, single buffered']
    #allocation10 [shape = 'u8[16384]{0}', space=vmem, size = 0x4000, scoped, tag = 'output window, operand 0, single buffered']
    %12 = vsyncpa [#allocation5], 0
    %13 = vsyncpa [#allocation8], 0
    %14 = vsyncpa [#allocation6], 0
    // Predicated region
    $region2: #{tpu_custom_call.1} parent=1 // pred_check
      _
    $region3: #{tpu_custom_call.1} parent=1 // pred_check_branch
      %16 = sbr.rel (0) target = $region5
    $region4: #{tpu_custom_call.1} parent=1 // pred_region
      %s18 = ssub.s32 512, 512
      %19 = vsyncadd [#allocation5], %s18
      %s20 = sshll.u32 [#allocation4], 4
      %s21 = int_to_ptr.vmem [resolvable:$true] %s20
      %26 = dma.hbm_to_vmem [thread:$0]  %s0, 512, %s21, [#allocation5], 128, 128, 8
    $region5: #{tpu_custom_call.1} parent=1 // pred_fallthru
      _
    // Predicated region
    $region6: #{tpu_custom_call.1} parent=1 // pred_check
      _
    $region7: #{tpu_custom_call.1} parent=1 // pred_check_branch
      %28 = sbr.rel (0) target = $region9
    $region8: #{tpu_custom_call.1} parent=1 // pred_region
      %s30 = ssub.s32 1536, 1536
      %31 = vsyncadd [#allocation8], %s30
      %s32 = sshll.u32 [#allocation7], 4
      %s33 = int_to_ptr.vmem [resolvable:$true] %s32
      %38 = dma.hbm_to_vmem [thread:$0]  %s1, 1536, %s33, [#allocation8], 64, 64, 4
    $region9: #{tpu_custom_call.1} parent=1 // pred_fallthru
      _
    // Predicated region
    $region10: #{tpu_custom_call.1} parent=1 // pred_check
      _
    $region11: #{tpu_custom_call.1} parent=1 // pred_check_branch
      %40 = sbr.rel (0) target = $region13
    $region12: #{tpu_custom_call.1} parent=1 // pred_region
      %s42 = ssub.s32 3072, 3072
      %43 = vsyncadd [#allocation8], %s42
      %s44 = sshll.u32 [#allocation9], 4
      %s45 = int_to_ptr.vmem [resolvable:$true] %s44
      %50 = dma.hbm_to_vmem [thread:$0]  %s2, 3072, %s45, [#allocation8], 64, 64, 4
    $region13: #{tpu_custom_call.1} parent=1 // pred_fallthru
      _
    // Predicated region
    $region14: #{tpu_custom_call.1} parent=1 // pred_check
      _
    $region15: #{tpu_custom_call.1} parent=1 // pred_check_branch
      %52 = sbr.rel (0) target = $region17
    $region16: #{tpu_custom_call.1} parent=1 // pred_region
      _
    $region17: #{tpu_custom_call.1} parent=1 // pred_fallthru
      _
    // Predicated region
    $region18: #{tpu_custom_call.1} parent=1 // pred_check
      _
    $region19: #{tpu_custom_call.1} parent=1 // pred_check_branch
      %54 = sbr.rel (0) target = $region21
    $region20: #{tpu_custom_call.1} parent=1 // pred_region
      _
    $region21: #{tpu_custom_call.1} parent=1 // pred_fallthru
      _
    // Predicated region
    $region22: #{tpu_custom_call.1} parent=1 // pred_check
      _
    $region23: #{tpu_custom_call.1} parent=1 // pred_check_branch
      %56 = sbr.rel (0) target = $region25
    $region24: #{tpu_custom_call.1} parent=1 // pred_region
      _
    $region25: #{tpu_custom_call.1} parent=1 // pred_fallthru
      _
    // Predicated region
    $region26: #{tpu_custom_call.1} parent=1 // pred_check
      _
    $region27: #{tpu_custom_call.1} parent=1 // pred_check_branch
      %58 = sbr.rel (0) target = $region29
    $region28: #{tpu_custom_call.1} parent=1 // pred_region
      _
    $region29: #{tpu_custom_call.1} parent=1 // pred_fallthru
      _
    // Predicated region
    $region30: #{tpu_custom_call.1} parent=1 // pred_check
      _
    $region31: #{tpu_custom_call.1} parent=1 // pred_check_branch
      %60 = sbr.rel (0) target = $region33
    $region32: #{tpu_custom_call.1} parent=1 // pred_region
      %61 = dma.done [#allocation5], 512
    $region33: #{tpu_custom_call.1} parent=1 // pred_fallthru
      _
    // Predicated region
    $region34: #{tpu_custom_call.1} parent=1 // pred_check
      _
    $region35: #{tpu_custom_call.1} parent=1 // pred_check_branch
      %63 = sbr.rel (0) target = $region37
    $region36: #{tpu_custom_call.1} parent=1 // pred_region
      %64 = dma.done [#allocation8], 1536
    $region37: #{tpu_custom_call.1} parent=1 // pred_fallthru
      _
    // Predicated region
    $region38: #{tpu_custom_call.1} parent=1 // pred_check
      _
    $region39: #{tpu_custom_call.1} parent=1 // pred_check_branch
      %66 = sbr.rel (0) target = $region41
    $region40: #{tpu_custom_call.1} parent=1 // pred_region
      %67 = dma.done [#allocation8], 3072
    $region41: #{tpu_custom_call.1} parent=1 // pred_fallthru
      _
    %v69 = vld [vmem:[#allocation4] sm:$0xff]
    %v70 = vld [vmem:[#allocation4 + $0x8] sm:$0xff]
    %v71 = vpack.c.bf16 %v70, %v69
    %73 = vrot.lane.b32.xlu0 %v71, 64
    %v74 = vpop.permute.xlu0 %73
    %vm76 = vcmask 1048064
    %77 = vst.msk [vmem:[#allocation2] sm:$0xff] %vm76, %v74
    %vm78 = vcmask 516096
    %vm79 = vsmask.f32 256
    %vm80 = vmand %vm78, %vm79
    %v81 = vld [vmem:[#allocation2] sm:$0x1]
    %v82 = vsel %vm80, 0, %v81
    %83 = vst [vmem:[#allocation2] sm:$0x1] %v82
    %v85 = vshrl.u32 %v71, 16
    %v87 = vrot.slane %v85, 7
    %v88 = vshll.u32 %v71, 16
    %v90 = vor.u32 %v87, %v88
    %vm92 = vcmask 523264
    %vm93 = vsmask.f32 7938
    %vm94 = vmand %vm92, %vm93
    %v95 = vld [vmem:[#allocation2] sm:$0xff]
    %v96 = vsel %vm94, %v90, %v95
    %97 = vst [vmem:[#allocation2] sm:$0xff] %v96
    %v98 = vrot.slane %v88, 1
    %v99 = vor.u32 %v85, %v98
    %vm101 = vsmask.f32 7424
    %vm102 = vmand %vm92, %vm101
    %v103 = vld [vmem:[#allocation2 + $0x8] sm:$0xff]
    %v104 = vsel %vm102, %v99, %v103
    %105 = vst [vmem:[#allocation2 + $0x8] sm:$0xff] %v104
    %vm106 = vcmask 523271
    %vm107 = vsmask.f32 7966
    %vm108 = vmand %vm106, %vm107
    %v109 = vld [vmem:[#allocation2 + $0x8] sm:$0x80]
    %v110 = vsel %vm108, 0, %v109
    %111 = vst [vmem:[#allocation2 + $0x8] sm:$0x80] %v110
    %s112 = scalar_lea.vmem [#allocation4], 16
    %v113 = vld [vmem:[%s112] sm:$0xff]
    %v114 = vld [vmem:[%s112 + $0x8] sm:$0xff]
    %v115 = vpack.c.bf16 %v114, %v113
    %117 = vrot.lane.b32.xlu0 %v115, 64
    %v118 = vpop.permute.xlu0 %117
    %120 = vst.msk [vmem:[#allocation2 + $0x10] sm:$0xff] %vm76, %v118
    %v121 = vld [vmem:[#allocation2 + $0x10] sm:$0x1]
    %v122 = vsel %vm80, 0, %v121
    %123 = vst [vmem:[#allocation2 + $0x10] sm:$0x1] %v122
    %v125 = vshrl.u32 %v115, 16
    %v127 = vrot.slane %v125, 7
    %v128 = vshll.u32 %v115, 16
    %v130 = vor.u32 %v127, %v128
    %v132 = vld [vmem:[#allocation2 + $0x10] sm:$0xff]
    %v133 = vsel %vm94, %v130, %v132
    %134 = vst [vmem:[#allocation2 + $0x10] sm:$0xff] %v133
    %v135 = vrot.slane %v128, 1
    %v136 = vor.u32 %v125, %v135
    %v138 = vld [vmem:[#allocation2 + $0x18] sm:$0xff]
    %v139 = vsel %vm102, %v136, %v138
    %140 = vst [vmem:[#allocation2 + $0x18] sm:$0xff] %v139
    %v141 = vld [vmem:[#allocation2 + $0x18] sm:$0x80]
    %v142 = vsel %vm108, 0, %v141
    %143 = vst [vmem:[#allocation2 + $0x18] sm:$0x80] %v142
    %v144 = vld [vmem:[#allocation2] sm:$0xff]
    %v145 = vld [vmem:[#allocation2 + $0x8] sm:$0xff]
    %v146 = vld [vmem:[#allocation2 + $0x10] sm:$0xff]
    %v147 = vld [vmem:[#allocation2 + $0x18] sm:$0xff]
    %v148 = vld [vmem:[#allocation7] sm:$0xf]
    %v149 = vld [vmem:[#allocation7 + $0x4] sm:$0xf]
    %v150 = vld [vmem:[#allocation7 + $0x8] sm:$0xf]
    %v151 = vld [vmem:[#allocation7 + $0xc] sm:$0xf]
    %v152 = vld [vmem:[#allocation7 + $0x10] sm:$0xf]
    %v153 = vld [vmem:[#allocation7 + $0x14] sm:$0xf]
    %v154 = vld [vmem:[#allocation7 + $0x18] sm:$0xf]
    %v155 = vld [vmem:[#allocation7 + $0x1c] sm:$0xf]
    %v156 = vld [vmem:[#allocation7 + $0x20] sm:$0xf]
    %v157 = vld [vmem:[#allocation7 + $0x24] sm:$0xf]
    %v158 = vld [vmem:[#allocation7 + $0x28] sm:$0xf]
    %v159 = vld [vmem:[#allocation7 + $0x2c] sm:$0xf]
    %v160 = vld [vmem:[#allocation7 + $0x30] sm:$0xf]
    %v161 = vld [vmem:[#allocation7 + $0x34] sm:$0xf]
    %v162 = vld [vmem:[#allocation7 + $0x38] sm:$0xf]
    %v163 = vld [vmem:[#allocation7 + $0x3c] sm:$0xf]
    %v164 = vld [vmem:[#allocation7 + $0x40] sm:$0xf]
    %v165 = vld [vmem:[#allocation7 + $0x44] sm:$0xf]
    %v166 = vld [vmem:[#allocation7 + $0x48] sm:$0xf]
    %v167 = vld [vmem:[#allocation7 + $0x4c] sm:$0xf]
    %v168 = vld [vmem:[#allocation7 + $0x50] sm:$0xf]
    %v169 = vld [vmem:[#allocation7 + $0x54] sm:$0xf]
    %v170 = vld [vmem:[#allocation7 + $0x58] sm:$0xf]
    %v171 = vld [vmem:[#allocation7 + $0x5c] sm:$0xf]
    %v196 = vunpack.c.l.b16 %v148
    %v197 = vunpack.c.l.b16 %v149
    %v198 = vunpack.c.l.b16 %v150
    %v199 = vunpack.c.l.b16 %v151
    %v200 = vunpack.c.l.b16 %v152
    %v201 = vunpack.c.l.b16 %v153
    %v202 = vunpack.c.l.b16 %v154
    %v203 = vunpack.c.l.b16 %v155
    %v204 = vunpack.c.l.b16 %v156
    %v205 = vunpack.c.l.b16 %v157
    %v206 = vunpack.c.l.b16 %v158
    %v207 = vunpack.c.l.b16 %v159
    %v208 = vunpack.c.l.b16 %v160
    %v209 = vunpack.c.l.b16 %v161
    %v210 = vunpack.c.l.b16 %v162
    %v211 = vunpack.c.l.b16 %v163
    %v212 = vunpack.c.l.b16 %v164
    %v213 = vunpack.c.l.b16 %v165
    %v214 = vunpack.c.l.b16 %v166
    %v215 = vunpack.c.l.b16 %v167
    %v216 = vunpack.c.l.b16 %v168
    %v217 = vunpack.c.l.b16 %v169
    %v218 = vunpack.c.l.b16 %v170
    %v219 = vunpack.c.l.b16 %v171
    %v220 = vpack.c.b16 %v197, %v196
    %v221 = vpack.c.b16 %v199, %v198
    %v222 = vpack.c.b16 %v201, %v200
    %v223 = vpack.c.b16 %v203, %v202
    %v224 = vpack.c.b16 %v205, %v204
    %v225 = vpack.c.b16 %v207, %v206
    %v226 = vpack.c.b16 %v209, %v208
    %v227 = vpack.c.b16 %v211, %v210
    %v228 = vpack.c.b16 %v213, %v212
    %v229 = vpack.c.b16 %v215, %v214
    %v230 = vpack.c.b16 %v217, %v216
    %v231 = vpack.c.b16 %v219, %v218
    %vm244 = vcmask 523264
    %v246 = vsel %vm244, %v145, 0
    %v249 = vsel %vm244, %v147, 0
    %251 = vmatprep.subr.bf16.mxu0 0
    %252 = vmatpush1.bf16.msra.mxu0 %v220
    %253 = vmatprep.subr.bf16.mxu0 0
    %254 = vmatpush1.bf16.msra.mxu0 %v221
    %255 = vmatprep.subr.bf16.mxu0 0
    %256 = vmatpush1.bf16.msra.mxu0 %v222
    %257 = vmatprep.subr.bf16.mxu0 0
    %258 = vmatpush1.bf16.msra.mxu0 %v223
    %259 = vmatprep.subr.bf16.mxu0 0
    %260 = vmatpush1.bf16.msra.mxu0 %v224
    %261 = vmatprep.subr.bf16.mxu0 0
    %262 = vmatpush1.bf16.msra.mxu0 %v225
    %263 = vmatprep.subr.bf16.mxu0 0
    %264 = vmatpush1.bf16.msra.mxu0 %v226
    %265 = vmatprep.subr.bf16.mxu0 0
    %266 = vmatpush1.bf16.msra.mxu0 %v227
    %267 = vmatprep.subr.bf16.mxu0 0
    %268 = vmatpush1.bf16.msra.mxu0 %v228
    %269 = vmatprep.subr.bf16.mxu0 0
    %270 = vmatpush1.bf16.msra.mxu0 %v229
    %271 = vmatprep.subr.bf16.mxu0 0
    %272 = vmatpush1.bf16.msra.mxu0 %v230
    %273 = vmatprep.subr.bf16.mxu0 0
    %274 = vmatpush1.bf16.msra.mxu0 %v231
    %275 = vmatprep.subr.bf16.mxu0 0
    %276 = vmatpush1.bf16.msra.mxu0 0
    %277 = vmatprep.subr.bf16.mxu0 0
    %278 = vmatpush1.bf16.msra.mxu0 0
    %279 = vmatprep.subr.bf16.mxu0 0
    %280 = vmatpush1.bf16.msra.mxu0 0
    %281 = vmatprep.subr.bf16.mxu0 0
    %282 = vmatpush1.bf16.msra.mxu0 0
    %283 = vmatprep.mubr.bf16.mxu0 %v246
    %284 = vmatmul.mubr.bf16.gmra.mrb[0].mxu0 %v144
    %v285 = vpop.f32.mrb[0].mxu0
    %v286 = vadd.f32 0.0, %v285
    %v287 = vpop.f32.mrb[0].mxu0
    %v288 = vpop.f32.mrb[0].mxu0
    %v289 = vadd.f32 0.0, %v288
    %v290 = vpop.f32.mrb[0].mxu0
    %291 = vmatprep.mubr.bf16.mxu0 %v249
    %292 = vmatmul.mubr.bf16.gmra.mrb[0].mxu0 %v146
    %v293 = vpop.f32.mrb[0].mxu0
    %v294 = vadd.f32 0.0, %v293
    %v295 = vpop.f32.mrb[0].mxu0
    %v296 = vpop.f32.mrb[0].mxu0
    %v297 = vadd.f32 0.0, %v296
    %v298 = vpop.f32.mrb[0].mxu0
    %299 = vdwg.mxu0
    %v300 = vld [vmem:[%s3] sm:$0x1]
    %v301 = vld [vmem:[%s4] sm:$0x1]
    %v302 = vadd.f32 %v286, %v289
    %303 = vadd.xlane.f32.xlu0 %v302
    %v304 = vpop.xlane.xlu0 %303
    %v305 = vrot.slane %v304, 4
    %v306 = vadd.f32 %v304, %v305
    %v307 = vrot.slane %v306, 2
    %v308 = vadd.f32 %v306, %v307
    %v309 = vrot.slane %v308, 1
    %v310 = vadd.f32 %v308, %v309
    %s311 = vtos %v310
    %v312 = vrcp.pop 2048.0
    %s313 = vtos %v312
    %s314 = smul.f32 %s311, %s313
    %v315 = vstv %s314
    %v316 = vsub.f32 %v286, %v315
    %v317 = vsub.f32 %v289, %v315
    %v318 = vmul.f32 %v316, %v316
    %v319 = vmul.f32 %v317, %v317
    %v320 = vadd.f32 %v318, %v319
    %321 = vadd.xlane.f32.xlu0 %v320
    %v322 = vpop.xlane.xlu0 %321
    %v323 = vrot.slane %v322, 4
    %v324 = vadd.f32 %v322, %v323
    %v325 = vrot.slane %v324, 2
    %v326 = vadd.f32 %v324, %v325
    %v327 = vrot.slane %v326, 1
    %v328 = vadd.f32 %v326, %v327
    %s329 = vtos %v328
    %v330 = vrcp.pop 2048.0
    %s331 = vtos %v330
    %s332 = smul.f32 %s329, %s331
    %s333 = sadd.f32 %s332, 1e-05
    %v334 = vstv %s333
    %v335 = vrsqrt.pop %v334
    %s336 = vtos %v335
    %v337 = vstv %s336
    %v338 = vmul.f32 %v316, %v337
    %v339 = vmul.f32 %v317, %v337
    %v341 = vlaneseq
    %v342 = vshrl.u32 %v341, 7
    %v343 = vsub.s32 0, %v342
    %v344 = vrot.slane %v300, %v343
    %v346 = vmul.f32 %v338, %v344
    %v347 = vmul.f32 %v339, %v344
    %v349 = vlaneseq
    %v350 = vshrl.u32 %v349, 7
    %v351 = vsub.s32 0, %v350
    %v352 = vrot.slane %v301, %v351
    %v354 = vadd.f32 %v346, %v352
    %v355 = vadd.f32 %v347, %v352
    %v356 = vmul.f32 %v354, 0.5
    %v357 = vmul.f32 %v355, 0.5
    %v358 = vmul.f32 %v354, 0.70710677
    %v359 = vmul.f32 %v355, 0.70710677
    %v360 = verf.f32.pop %v358
    %v361 = verf.f32.pop %v359
    %v362 = vadd.f32 %v360, 1.0
    %v363 = vadd.f32 %v361, 1.0
    %v364 = vmul.f32 %v356, %v362
    %v365 = vmul.f32 %v357, %v363
    %v366 = vpack.c.bf16 %v365, %v364
    %367 = vst [vmem:[#allocation3 + $0x8] sm:$0xff] %v366
    %vm368 = vcmask 1040384
    %vm369 = vmand %vm368, %vm79
    %v370 = vld [vmem:[#allocation3] sm:$0x1]
    %v371 = vsel %vm369, 0, %v370
    %372 = vst [vmem:[#allocation3] sm:$0x1] %v371
    %v374 = vshrl.u32 %v366, 16
    %v376 = vrot.slane %v374, 7
    %v377 = vshll.u32 %v366, 16
    %v379 = vor.u32 %v376, %v377
    %vm381 = vcmask 1047552
    %vm382 = vmand %vm381, %vm93
    %v383 = vld [vmem:[#allocation3] sm:$0xff]
    %v384 = vsel %vm382, %v379, %v383
    %385 = vst [vmem:[#allocation3] sm:$0xff] %v384
    %v386 = vrot.slane %v377, 1
    %v387 = vor.u32 %v374, %v386
    %vm389 = vmand %vm381, %vm101
    %v390 = vld [vmem:[#allocation3 + $0x10] sm:$0xff]
    %v391 = vsel %vm389, %v387, %v390
    %392 = vst [vmem:[#allocation3 + $0x10] sm:$0xff] %v391
    %vm393 = vcmask 1047559
    %vm394 = vmand %vm393, %vm107
    %v395 = vld [vmem:[#allocation3 + $0x10] sm:$0x80]
    %v396 = vsel %vm394, 0, %v395
    %397 = vst [vmem:[#allocation3 + $0x10] sm:$0x80] %v396
    %v398 = vadd.f32 %v294, %v297
    %399 = vadd.xlane.f32.xlu0 %v398
    %v400 = vpop.xlane.xlu0 %399
    %v401 = vrot.slane %v400, 4
    %v402 = vadd.f32 %v400, %v401
    %v403 = vrot.slane %v402, 2
    %v404 = vadd.f32 %v402, %v403
    %v405 = vrot.slane %v404, 1
    %v406 = vadd.f32 %v404, %v405
    %s407 = vtos %v406
    %v408 = vrcp.pop 2048.0
    %s409 = vtos %v408
    %s410 = smul.f32 %s407, %s409
    %v411 = vstv %s410
    %v412 = vsub.f32 %v294, %v411
    %v413 = vsub.f32 %v297, %v411
    %v414 = vmul.f32 %v412, %v412
    %v415 = vmul.f32 %v413, %v413
    %v416 = vadd.f32 %v414, %v415
    %417 = vadd.xlane.f32.xlu0 %v416
    %v418 = vpop.xlane.xlu0 %417
    %v419 = vrot.slane %v418, 4
    %v420 = vadd.f32 %v418, %v419
    %v421 = vrot.slane %v420, 2
    %v422 = vadd.f32 %v420, %v421
    %v423 = vrot.slane %v422, 1
    %v424 = vadd.f32 %v422, %v423
    %s425 = vtos %v424
    %v426 = vrcp.pop 2048.0
    %s427 = vtos %v426
    %s428 = smul.f32 %s425, %s427
    %s429 = sadd.f32 %s428, 1e-05
    %v430 = vstv %s429
    %v431 = vrsqrt.pop %v430
    %s432 = vtos %v431
    %v433 = vstv %s432
    %v434 = vmul.f32 %v412, %v433
    %v435 = vmul.f32 %v413, %v433
    %v436 = vmul.f32 %v434, %v344
    %v437 = vmul.f32 %v435, %v344
    %v438 = vadd.f32 %v436, %v352
    %v439 = vadd.f32 %v437, %v352
    %v440 = vmul.f32 %v438, 0.5
    %v441 = vmul.f32 %v439, 0.5
    %v442 = vmul.f32 %v438, 0.70710677
    %v443 = vmul.f32 %v439, 0.70710677
    %v444 = verf.f32.pop %v442
    %v445 = verf.f32.pop %v443
    %v446 = vadd.f32 %v444, 1.0
    %v447 = vadd.f32 %v445, 1.0
    %v448 = vmul.f32 %v440, %v446
    %v449 = vmul.f32 %v441, %v447
    %v450 = vpack.c.bf16 %v449, %v448
    %451 = vst [vmem:[#allocation3 + $0x20] sm:$0xff] %v450
    %v452 = vld [vmem:[#allocation3 + $0x18] sm:$0x1]
    %v453 = vsel %vm369, 0, %v452
    %454 = vst [vmem:[#allocation3 + $0x18] sm:$0x1] %v453
    %v456 = vshrl.u32 %v450, 16
    %v458 = vrot.slane %v456, 7
    %v459 = vshll.u32 %v450, 16
    %v461 = vor.u32 %v458, %v459
    %v463 = vld [vmem:[#allocation3 + $0x18] sm:$0xff]
    %v464 = vsel %vm382, %v461, %v463
    %465 = vst [vmem:[#allocation3 + $0x18] sm:$0xff] %v464
    %v466 = vrot.slane %v459, 1
    %v467 = vor.u32 %v456, %v466
    %v469 = vld [vmem:[#allocation3 + $0x28] sm:$0xff]
    %v470 = vsel %vm389, %v467, %v469
    %471 = vst [vmem:[#allocation3 + $0x28] sm:$0xff] %v470
    %v472 = vld [vmem:[#allocation3 + $0x28] sm:$0x80]
    %v473 = vsel %vm394, 0, %v472
    %474 = vst [vmem:[#allocation3 + $0x28] sm:$0x80] %v473
    %v475 = vld [vmem:[#allocation3] sm:$0xff]
    %v476 = vld [vmem:[#allocation3 + $0x8] sm:$0xff]
    %v477 = vld [vmem:[#allocation3 + $0x10] sm:$0xff]
    %v478 = vld [vmem:[#allocation3 + $0x18] sm:$0xff]
    %v479 = vld [vmem:[#allocation3 + $0x20] sm:$0xff]
    %v480 = vld [vmem:[#allocation3 + $0x28] sm:$0xff]
    %v481 = vld [vmem:[#allocation9] sm:$0xf]
    %v482 = vld [vmem:[#allocation9 + $0x4] sm:$0xf]
    %v483 = vld [vmem:[#allocation9 + $0x8] sm:$0xf]
    %v484 = vld [vmem:[#allocation9 + $0xc] sm:$0xf]
    %v485 = vld [vmem:[#allocation9 + $0x10] sm:$0xf]
    %v486 = vld [vmem:[#allocation9 + $0x14] sm:$0xf]
    %v487 = vld [vmem:[#allocation9 + $0x18] sm:$0xf]
    %v488 = vld [vmem:[#allocation9 + $0x1c] sm:$0xf]
    %v489 = vld [vmem:[#allocation9 + $0x20] sm:$0xf]
    %v490 = vld [vmem:[#allocation9 + $0x24] sm:$0xf]
    %v491 = vld [vmem:[#allocation9 + $0x28] sm:$0xf]
    %v492 = vld [vmem:[#allocation9 + $0x2c] sm:$0xf]
    %v493 = vld [vmem:[#allocation9 + $0x30] sm:$0xf]
    %v494 = vld [vmem:[#allocation9 + $0x34] sm:$0xf]
    %v495 = vld [vmem:[#allocation9 + $0x38] sm:$0xf]
    %v496 = vld [vmem:[#allocation9 + $0x3c] sm:$0xf]
    %v497 = vld [vmem:[#allocation9 + $0x40] sm:$0xf]
    %v498 = vld [vmem:[#allocation9 + $0x44] sm:$0xf]
    %v499 = vld [vmem:[#allocation9 + $0x48] sm:$0xf]
    %v500 = vld [vmem:[#allocation9 + $0x4c] sm:$0xf]
    %v501 = vld [vmem:[#allocation9 + $0x50] sm:$0xf]
    %v502 = vld [vmem:[#allocation9 + $0x54] sm:$0xf]
    %v503 = vld [vmem:[#allocation9 + $0x58] sm:$0xf]
    %v504 = vld [vmem:[#allocation9 + $0x5c] sm:$0xf]
    %v505 = vld [vmem:[#allocation9 + $0x60] sm:$0xf]
    %v506 = vld [vmem:[#allocation9 + $0x64] sm:$0xf]
    %v507 = vld [vmem:[#allocation9 + $0x68] sm:$0xf]
    %v508 = vld [vmem:[#allocation9 + $0x6c] sm:$0xf]
    %v509 = vld [vmem:[#allocation9 + $0x70] sm:$0xf]
    %v510 = vld [vmem:[#allocation9 + $0x74] sm:$0xf]
    %v511 = vld [vmem:[#allocation9 + $0x78] sm:$0xf]
    %v512 = vld [vmem:[#allocation9 + $0x7c] sm:$0xf]
    %v513 = vld [vmem:[#allocation9 + $0x80] sm:$0xf]
    %v514 = vld [vmem:[#allocation9 + $0x84] sm:$0xf]
    %v515 = vld [vmem:[#allocation9 + $0x88] sm:$0xf]
    %v516 = vld [vmem:[#allocation9 + $0x8c] sm:$0xf]
    %v517 = vld [vmem:[#allocation9 + $0x90] sm:$0xf]
    %v518 = vld [vmem:[#allocation9 + $0x94] sm:$0xf]
    %v519 = vld [vmem:[#allocation9 + $0x98] sm:$0xf]
    %v520 = vld [vmem:[#allocation9 + $0x9c] sm:$0xf]
    %v521 = vld [vmem:[#allocation9 + $0xa0] sm:$0xf]
    %v522 = vld [vmem:[#allocation9 + $0xa4] sm:$0xf]
    %v523 = vld [vmem:[#allocation9 + $0xa8] sm:$0xf]
    %v524 = vld [vmem:[#allocation9 + $0xac] sm:$0xf]
    %v525 = vld [vmem:[#allocation9 + $0xb0] sm:$0xf]
    %v526 = vld [vmem:[#allocation9 + $0xb4] sm:$0xf]
    %v527 = vld [vmem:[#allocation9 + $0xb8] sm:$0xf]
    %v528 = vld [vmem:[#allocation9 + $0xbc] sm:$0xf]
    %v577 = vunpack.c.l.b16 %v481
    %v578 = vunpack.c.l.b16 %v482
    %v579 = vunpack.c.l.b16 %v483
    %v580 = vunpack.c.l.b16 %v484
    %v581 = vunpack.c.l.b16 %v485
    %v582 = vunpack.c.l.b16 %v486
    %v583 = vunpack.c.l.b16 %v487
    %v584 = vunpack.c.l.b16 %v488
    %v585 = vunpack.c.l.b16 %v489
    %v586 = vunpack.c.l.b16 %v490
    %v587 = vunpack.c.l.b16 %v491
    %v588 = vunpack.c.l.b16 %v492
    %v589 = vunpack.c.l.b16 %v493
    %v590 = vunpack.c.l.b16 %v494
    %v591 = vunpack.c.l.b16 %v495
    %v592 = vunpack.c.l.b16 %v496
    %v593 = vunpack.c.l.b16 %v497
    %v594 = vunpack.c.l.b16 %v498
    %v595 = vunpack.c.l.b16 %v499
    %v596 = vunpack.c.l.b16 %v500
    %v597 = vunpack.c.l.b16 %v501
    %v598 = vunpack.c.l.b16 %v502
    %v599 = vunpack.c.l.b16 %v503
    %v600 = vunpack.c.l.b16 %v504
    %v601 = vunpack.c.l.b16 %v505
    %v602 = vunpack.c.l.b16 %v506
    %v603 = vunpack.c.l.b16 %v507
    %v604 = vunpack.c.l.b16 %v508
    %v605 = vunpack.c.l.b16 %v509
    %v606 = vunpack.c.l.b16 %v510
    %v607 = vunpack.c.l.b16 %v511
    %v608 = vunpack.c.l.b16 %v512
    %v609 = vunpack.c.l.b16 %v513
    %v610 = vunpack.c.l.b16 %v514
    %v611 = vunpack.c.l.b16 %v515
    %v612 = vunpack.c.l.b16 %v516
    %v613 = vunpack.c.l.b16 %v517
    %v614 = vunpack.c.l.b16 %v518
    %v615 = vunpack.c.l.b16 %v519
    %v616 = vunpack.c.l.b16 %v520
    %v617 = vunpack.c.l.b16 %v521
    %v618 = vunpack.c.l.b16 %v522
    %v619 = vunpack.c.l.b16 %v523
    %v620 = vunpack.c.l.b16 %v524
    %v621 = vunpack.c.l.b16 %v525
    %v622 = vunpack.c.l.b16 %v526
    %v623 = vunpack.c.l.b16 %v527
    %v624 = vunpack.c.l.b16 %v528
    %v625 = vpack.c.b16 %v578, %v577
    %v626 = vpack.c.b16 %v580, %v579
    %v627 = vpack.c.b16 %v582, %v581
    %v628 = vpack.c.b16 %v584, %v583
    %v629 = vpack.c.b16 %v586, %v585
    %v630 = vpack.c.b16 %v588, %v587
    %v631 = vpack.c.b16 %v590, %v589
    %v632 = vpack.c.b16 %v592, %v591
    %v633 = vpack.c.b16 %v594, %v593
    %v634 = vpack.c.b16 %v596, %v595
    %v635 = vpack.c.b16 %v598, %v597
    %v636 = vpack.c.b16 %v600, %v599
    %v637 = vpack.c.b16 %v602, %v601
    %v638 = vpack.c.b16 %v604, %v603
    %v639 = vpack.c.b16 %v606, %v605
    %v640 = vpack.c.b16 %v608, %v607
    %v641 = vpack.c.b16 %v610, %v609
    %v642 = vpack.c.b16 %v612, %v611
    %v643 = vpack.c.b16 %v614, %v613
    %v644 = vpack.c.b16 %v616, %v615
    %v645 = vpack.c.b16 %v618, %v617
    %v646 = vpack.c.b16 %v620, %v619
    %v647 = vpack.c.b16 %v622, %v621
    %v648 = vpack.c.b16 %v624, %v623
    %673 = vmatprep.subr.bf16.mxu0 0
    %674 = vmatpush1.bf16.msra.mxu0 %v625
    %675 = vmatprep.subr.bf16.mxu0 0
    %676 = vmatpush1.bf16.msra.mxu0 %v626
    %677 = vmatprep.subr.bf16.mxu0 0
    %678 = vmatpush1.bf16.msra.mxu0 %v627
    %679 = vmatprep.subr.bf16.mxu0 0
    %680 = vmatpush1.bf16.msra.mxu0 %v628
    %681 = vmatprep.subr.bf16.mxu0 0
    %682 = vmatpush1.bf16.msra.mxu0 %v629
    %683 = vmatprep.subr.bf16.mxu0 0
    %684 = vmatpush1.bf16.msra.mxu0 %v630
    %685 = vmatprep.subr.bf16.mxu0 0
    %686 = vmatpush1.bf16.msra.mxu0 %v631
    %687 = vmatprep.subr.bf16.mxu0 0
    %688 = vmatpush1.bf16.msra.mxu0 %v632
    %689 = vmatprep.subr.bf16.mxu0 0
    %690 = vmatpush1.bf16.msra.mxu0 %v633
    %691 = vmatprep.subr.bf16.mxu0 0
    %692 = vmatpush1.bf16.msra.mxu0 %v634
    %693 = vmatprep.subr.bf16.mxu0 0
    %694 = vmatpush1.bf16.msra.mxu0 %v635
    %695 = vmatprep.subr.bf16.mxu0 0
    %696 = vmatpush1.bf16.msra.mxu0 %v636
    %697 = vmatprep.subr.bf16.mxu0 0
    %698 = vmatpush1.bf16.msra.mxu0 %v637
    %699 = vmatprep.subr.bf16.mxu0 0
    %700 = vmatpush1.bf16.msra.mxu0 %v638
    %701 = vmatprep.subr.bf16.mxu0 0
    %702 = vmatpush1.bf16.msra.mxu0 %v639
    %703 = vmatprep.subr.bf16.mxu0 0
    %704 = vmatpush1.bf16.msra.mxu0 %v640
    %705 = vmatprep.mubr.bf16.mxu0 %v476
    %706 = vmatmul.mubr.bf16.gmra.mrb[0].mxu0 %v475
    %v707 = vpop.f32.mrb[0].mxu0
    %v708 = vadd.f32 0.0, %v707
    %v709 = vpop.f32.mrb[0].mxu0
    %v710 = vpop.f32.mrb[0].mxu0
    %v711 = vadd.f32 0.0, %v710
    %v712 = vpop.f32.mrb[0].mxu0
    %713 = vmatprep.mubr.bf16.mxu0 %v479
    %714 = vmatmul.mubr.bf16.gmra.mrb[0].mxu0 %v478
    %v715 = vpop.f32.mrb[0].mxu0
    %v716 = vadd.f32 0.0, %v715
    %v717 = vpop.f32.mrb[0].mxu0
    %v718 = vpop.f32.mrb[0].mxu0
    %v719 = vadd.f32 0.0, %v718
    %v720 = vpop.f32.mrb[0].mxu0
    %721 = vdwg.mxu0
    %722 = vmatprep.subr.bf16.mxu0 0
    %723 = vmatpush1.bf16.msra.mxu0 %v641
    %724 = vmatprep.subr.bf16.mxu0 0
    %725 = vmatpush1.bf16.msra.mxu0 %v642
    %726 = vmatprep.subr.bf16.mxu0 0
    %727 = vmatpush1.bf16.msra.mxu0 %v643
    %728 = vmatprep.subr.bf16.mxu0 0
    %729 = vmatpush1.bf16.msra.mxu0 %v644
    %730 = vmatprep.subr.bf16.mxu0 0
    %731 = vmatpush1.bf16.msra.mxu0 %v645
    %732 = vmatprep.subr.bf16.mxu0 0
    %733 = vmatpush1.bf16.msra.mxu0 %v646
    %734 = vmatprep.subr.bf16.mxu0 0
    %735 = vmatpush1.bf16.msra.mxu0 %v647
    %736 = vmatprep.subr.bf16.mxu0 0
    %737 = vmatpush1.bf16.msra.mxu0 %v648
    %738 = vmatprep.subr.bf16.mxu0 0
    %739 = vmatpush1.bf16.msra.mxu0 0
    %740 = vmatprep.subr.bf16.mxu0 0
    %741 = vmatpush1.bf16.msra.mxu0 0
    %742 = vmatprep.subr.bf16.mxu0 0
    %743 = vmatpush1.bf16.msra.mxu0 0
    %744 = vmatprep.subr.bf16.mxu0 0
    %745 = vmatpush1.bf16.msra.mxu0 0
    %746 = vmatprep.subr.bf16.mxu0 0
    %747 = vmatpush1.bf16.msra.mxu0 0
    %748 = vmatprep.subr.bf16.mxu0 0
    %749 = vmatpush1.bf16.msra.mxu0 0
    %750 = vmatprep.subr.bf16.mxu0 0
    %751 = vmatpush1.bf16.msra.mxu0 0
    %752 = vmatprep.subr.bf16.mxu0 0
    %753 = vmatpush1.bf16.msra.mxu0 0
    %754 = vmatprep.mubr.bf16.mxu0 0
    %755 = vmatmul.mubr.bf16.gmra.mrb[0].mxu0 %v477
    %v756 = vpop.f32.mrb[0].mxu0
    %v757 = vadd.f32 %v708, %v756
    %v758 = vpop.f32.mrb[0].mxu0
    %v759 = vpop.f32.mrb[0].mxu0
    %v760 = vadd.f32 %v711, %v759
    %v761 = vpop.f32.mrb[0].mxu0
    %762 = vmatprep.mubr.bf16.mxu0 0
    %763 = vmatmul.mubr.bf16.gmra.mrb[0].mxu0 %v480
    %v764 = vpop.f32.mrb[0].mxu0
    %v765 = vadd.f32 %v716, %v764
    %v766 = vpop.f32.mrb[0].mxu0
    %v767 = vpop.f32.mrb[0].mxu0
    %v768 = vadd.f32 %v719, %v767
    %v769 = vpop.f32.mrb[0].mxu0
    %770 = vdwg.mxu0
    %v771 = vld [vmem:[%s5] sm:$0x1]
    %v772 = vld [vmem:[%s6] sm:$0x1]
    %v773 = vadd.f32 %v757, %v760
    %774 = vadd.xlane.f32.xlu0 %v773
    %v775 = vpop.xlane.xlu0 %774
    %v776 = vrot.slane %v775, 4
    %v777 = vadd.f32 %v775, %v776
    %v778 = vrot.slane %v777, 2
    %v779 = vadd.f32 %v777, %v778
    %v780 = vrot.slane %v779, 1
    %v781 = vadd.f32 %v779, %v780
    %s782 = vtos %v781
    %v783 = vrcp.pop 2048.0
    %s784 = vtos %v783
    %s785 = smul.f32 %s782, %s784
    %v786 = vstv %s785
    %v787 = vsub.f32 %v757, %v786
    %v788 = vsub.f32 %v760, %v786
    %v789 = vmul.f32 %v787, %v787
    %v790 = vmul.f32 %v788, %v788
    %v791 = vadd.f32 %v789, %v790
    %792 = vadd.xlane.f32.xlu0 %v791
    %v793 = vpop.xlane.xlu0 %792
    %v794 = vrot.slane %v793, 4
    %v795 = vadd.f32 %v793, %v794
    %v796 = vrot.slane %v795, 2
    %v797 = vadd.f32 %v795, %v796
    %v798 = vrot.slane %v797, 1
    %v799 = vadd.f32 %v797, %v798
    %s800 = vtos %v799
    %v801 = vrcp.pop 2048.0
    %s802 = vtos %v801
    %s803 = smul.f32 %s800, %s802
    %s804 = sadd.f32 %s803, 1e-05
    %v805 = vstv %s804
    %v806 = vrsqrt.pop %v805
    %s807 = vtos %v806
    %v808 = vstv %s807
    %v809 = vmul.f32 %v787, %v808
    %v810 = vmul.f32 %v788, %v808
    %v812 = vlaneseq
    %v813 = vshrl.u32 %v812, 7
    %v814 = vsub.s32 0, %v813
    %v815 = vrot.slane %v771, %v814
    %v817 = vmul.f32 %v809, %v815
    %v818 = vmul.f32 %v810, %v815
    %v820 = vlaneseq
    %v821 = vshrl.u32 %v820, 7
    %v822 = vsub.s32 0, %v821
    %v823 = vrot.slane %v772, %v822
    %v825 = vadd.f32 %v817, %v823
    %v826 = vadd.f32 %v818, %v823
    %827 = vst [vmem:[#allocation10] sm:$0xff] %v825
    %828 = vst [vmem:[#allocation10 + $0x8] sm:$0xff] %v826
    %v829 = vadd.f32 %v765, %v768
    %830 = vadd.xlane.f32.xlu0 %v829
    %v831 = vpop.xlane.xlu0 %830
    %v832 = vrot.slane %v831, 4
    %v833 = vadd.f32 %v831, %v832
    %v834 = vrot.slane %v833, 2
    %v835 = vadd.f32 %v833, %v834
    %v836 = vrot.slane %v835, 1
    %v837 = vadd.f32 %v835, %v836
    %s838 = vtos %v837
    %v839 = vrcp.pop 2048.0
    %s840 = vtos %v839
    %s841 = smul.f32 %s838, %s840
    %v842 = vstv %s841
    %v843 = vsub.f32 %v765, %v842
    %v844 = vsub.f32 %v768, %v842
    %v845 = vmul.f32 %v843, %v843
    %v846 = vmul.f32 %v844, %v844
    %v847 = vadd.f32 %v845, %v846
    %848 = vadd.xlane.f32.xlu0 %v847
    %v849 = vpop.xlane.xlu0 %848
    %v850 = vrot.slane %v849, 4
    %v851 = vadd.f32 %v849, %v850
    %v852 = vrot.slane %v851, 2
    %v853 = vadd.f32 %v851, %v852
    %v854 = vrot.slane %v853, 1
    %v855 = vadd.f32 %v853, %v854
    %s856 = vtos %v855
    %v857 = vrcp.pop 2048.0
    %s858 = vtos %v857
    %s859 = smul.f32 %s856, %s858
    %s860 = sadd.f32 %s859, 1e-05
    %v861 = vstv %s860
    %v862 = vrsqrt.pop %v861
    %s863 = vtos %v862
    %v864 = vstv %s863
    %v865 = vmul.f32 %v843, %v864
    %v866 = vmul.f32 %v844, %v864
    %v867 = vmul.f32 %v865, %v815
    %v868 = vmul.f32 %v866, %v815
    %v869 = vadd.f32 %v867, %v823
    %v870 = vadd.f32 %v868, %v823
    %s871 = scalar_lea.vmem [#allocation10], 16
    %872 = vst [vmem:[%s871] sm:$0xff] %v869
    %873 = vst [vmem:[%s871 + $0x8] sm:$0xff] %v870
    // Predicated region
    $region42: #{tpu_custom_call.1} parent=1 // pred_check
      _
    $region43: #{tpu_custom_call.1} parent=1 // pred_check_branch
      %875 = sbr.rel (0) target = $region45
    $region44: #{tpu_custom_call.1} parent=1 // pred_region
      %s877 = ssub.s32 512, 512
      %878 = vsyncadd [#allocation6], %s877
      %s879 = sshll.u32 [#allocation10], 4
      %s880 = int_to_ptr.vmem [resolvable:$true] %s879
      %885 = dma.vmem_to_hbm [thread:$0]  %s880, 512, %s7, [#allocation6], 128, 128, 8
    $region45: #{tpu_custom_call.1} parent=1 // pred_fallthru
      _
    // Predicated region
    $region46: #{tpu_custom_call.1} parent=1 // pred_check
      _
    $region47: #{tpu_custom_call.1} parent=1 // pred_check_branch
      %887 = sbr.rel (0) target = $region49
    $region48: #{tpu_custom_call.1} parent=1 // pred_region
      %888 = dma.done [#allocation6], 512
    $region49: #{tpu_custom_call.1} parent=1 // pred_fallthru
      _
    %889 = vsyncpa [#allocation5], 1
    %890 = vsyncpa [#allocation8], 1
    %891 = vsyncpa [#allocation6], 1

</llo_original>
